<compile_context>
chip_gen: v7x
topology: tpu7x:2x2x1
jax: 0.10.0
libtpu: 0.0.40
codegen_flags: <defaults>
</compile_context>

<pallas_src>
import functools

import jax
import jax.numpy as jnp
import numpy as np
from jax import lax
from jax.experimental import pallas as pl
from jax.experimental.pallas import tpu as pltpu


def _residual_block_kernel(x_ref, mcat_ref, b1_ref, w2_ref, b2_ref, out_ref,
                           col_ref, *, img_h, mm_dtype):
    """One grid step: a block of whole images in lane-folded layout.

    x_ref/out_ref : (R, WC)     R = block_batch * H image rows, WC = W * C.
    mcat_ref      : (3*WC, WC)  banded conv1 weight slab (see _fold_params).
    b1_ref,b2_ref : (1, WC)     folded biases (b1 zeroed on W-border columns).
    w2_ref        : (WC, WC)    block-diagonal conv2 (1x1) weights.
    col_ref       : (R, 3*WC)   VMEM scratch: row-im2col buffer.
    """
    x = x_ref[...]                                    # f32 (R, WC)
    R, WC = x.shape

    # nn.ReLU()
    h = jnp.maximum(x, 0.0)

    # Row-im2col: col[r] = [h[r-1] | h[r] | h[r+1]].  Rows crossing an image /
    # block boundary only pollute H-border rows, which are masked below; the
    # block edges are zero-filled explicitly.
    zero_row = jnp.zeros((1, WC), h.dtype)
    col_ref[:, WC:2 * WC] = h
    col_ref[0:1, 0:WC] = zero_row
    col_ref[1:R, 0:WC] = h[0:R - 1, :]
    col_ref[0:R - 1, 2 * WC:3 * WC] = h[1:R, :]
    col_ref[R - 1:R, 2 * WC:3 * WC] = zero_row

    # Conv2d(C, C, 3, padding=0) + channel mixing as ONE deep matmul (K=3*W*C).
    acc = jnp.dot(col_ref[...].astype(mm_dtype), mcat_ref[...],
                  preferred_element_type=jnp.float32)            # (R, WC)

    # + b1, ReLU(inplace=True).  Image rows 0 and H-1 (where the valid conv
    # has no output) are forced to zero: they act as the 1x1 conv's zero
    # padding along H.  Its W padding is already baked into the zero border
    # columns of mcat / b1f.
    row_in_img = lax.broadcasted_iota(jnp.int32, (R, WC), 0) % img_h
    interior = jnp.logical_and(row_in_img > 0, row_in_img < img_h - 1)
    t = jnp.where(interior, jnp.maximum(acc + b1_ref[...], 0.0), 0.0)

    # Conv2d(C, C, 1, padding=1): block-diagonal matmul + b2.  Padded (zero)
    # positions come out as exactly b2, matching the PyTorch module.
    z = jnp.dot(t.astype(mm_dtype), w2_ref[...],
                preferred_element_type=jnp.float32) + b2_ref[...]

    # Residual add; single aligned full-tile store.
    out_ref[...] = (x + z).astype(out_ref.dtype)


def _fold_params(w1, b1, w2, b2, W, C, matmul_dtype):
    """Precompute lane-dense folded weights (wrapper-side, plain JAX).

    Mcat[(s*WC + j_in*C + ci), (j_out*C + co)] = w1[s, dj, ci, co]
      with j_in = j_out - 1 + dj, only for j_out in [1, W-2]; the three row
      segments s = 0,1,2 multiply h[r-1], h[r], h[r+1] respectively.  Border
      output columns (j_out in {0, W-1}) are zero, encoding the 1x1 conv's
      W zero-padding.  w2f = kron(I_W, w2) is the folded 1x1 conv.
    """
    WC = W * C
    f32 = jnp.float32
    mats = []
    for di in range(3):
        m = jnp.zeros((WC, WC), f32)
        for dj in range(3):
            sel = np.zeros((W, W), np.float32)
            for j in range(1, W - 1):
                sel[j - 1 + dj, j] = 1.0
            m = m + jnp.kron(jnp.asarray(sel), w1[di, dj].astype(f32))
        mats.append(m)
    mcat = jnp.concatenate(mats, axis=0)                           # (3*WC, WC)

    w2f = jnp.kron(jnp.eye(W, dtype=f32), w2.astype(f32))          # (WC, WC)

    col_interior = np.zeros((W, 1), np.float32)
    col_interior[1:W - 1, 0] = 1.0
    b1f = (jnp.asarray(col_interior) * b1.astype(f32)[None, :]).reshape(1, WC)
    b2f = jnp.broadcast_to(b2.astype(f32), (W, C)).reshape(1, WC)
    return mcat.astype(matmul_dtype), b1f, w2f.astype(matmul_dtype), b2f


def _pick_block_batch(B, H, WC, *, target_bytes=512 * 1024):
    """Images per grid step: big enough to amortize the ~0.35us/step overhead,
    small enough that double-buffered in+out blocks plus intermediates stay
    well under the scoped-VMEM default on v5e/v6e/v7x, and (when possible)
    >= 2 grid steps so 2-TC chips can shard the 'parallel' axis."""
    per_img = H * WC * 4
    bt = int(max(1, min(B, target_bytes // max(per_img, 1))))
    while B % bt:
        bt -= 1
    if B >= 2 and B // bt < 2:
        bt = max(1, bt // 2)
        while B % bt:
            bt -= 1
    return bt


def residual_block_nhwc(x, w1, b1, w2, b2, *, matmul_dtype=jnp.float32,
                        block_batch=None):
    """x: (B, H, W, C) f32.  w1: (3,3,C,C) HWIO.  w2: (C,C).  b1,b2: (C,)."""
    B, H, W, C = x.shape
    WC = W * C
    mcat, b1f, w2f, b2f = _fold_params(w1, b1, w2, b2, W, C, matmul_dtype)

    bt = _pick_block_batch(B, H, WC) if block_batch is None else block_batch
    assert B % bt == 0, "block_batch must divide the batch"
    R = bt * H

    # Free layout fold: (B, H, W, C) row-major == (B*H, W*C).
    x2 = x.reshape(B * H, WC)

    kernel = functools.partial(_residual_block_kernel, img_h=H,
                               mm_dtype=matmul_dtype)
    out2 = pl.pallas_call(
        kernel,
        out_shape=jax.ShapeDtypeStruct((B * H, WC), x.dtype),
        grid_spec=pltpu.PrefetchScalarGridSpec(
            num_scalar_prefetch=0,
            grid=(B // bt,),
            in_specs=[
                pl.BlockSpec((R, WC), lambda i: (i, 0)),
                pl.BlockSpec((3 * WC, WC), lambda i: (0, 0)),
                pl.BlockSpec((1, WC), lambda i: (0, 0)),
                pl.BlockSpec((WC, WC), lambda i: (0, 0)),
                pl.BlockSpec((1, WC), lambda i: (0, 0)),
            ],
            out_specs=pl.BlockSpec((R, WC), lambda i: (i, 0)),
            scratch_shapes=[pltpu.VMEM((R, 3 * WC), jnp.float32)],
        ),
        compiler_params=pltpu.CompilerParams(
            dimension_semantics=("parallel",)),
    )(x2, mcat, b1f, w2f, b2f)

    return out2.reshape(B, H, W, C)


def residual_block_nchw(x_nchw, w1, b1, w2, b2, *, matmul_dtype=jnp.float32,
                        block_batch=None):
    """PyTorch-convention entry point: x (B, C, H, W) -> (B, C, H, W)."""
    x_nhwc = jnp.transpose(x_nchw, (0, 2, 3, 1))
    out_nhwc = residual_block_nhwc(x_nhwc, w1, b1, w2, b2,
                                   matmul_dtype=matmul_dtype,
                                   block_batch=block_batch)
    return jnp.transpose(out_nhwc, (0, 3, 1, 2))


def ref_forward_nhwc(x, w1, b1, w2, b2):
    """Pure-JAX reference (mirrors the PyTorch module)."""
    C = x.shape[-1]
    dn = ("NHWC", "HWIO", "NHWC")
    h = jax.nn.relu(x)
    y = lax.conv_general_dilated(h, w1, (1, 1), "VALID",
                                 dimension_numbers=dn) + b1.reshape(1, 1, 1, C)
    y = jax.nn.relu(y)
    z = lax.conv_general_dilated(y, w2.reshape(1, 1, C, C), (1, 1),
                                 ((1, 1), (1, 1)),
                                 dimension_numbers=dn) + b2.reshape(1, 1, 1, C)
    return z + x


if __name__ == "__main__":
    B, C, H, W = 2, 4, 16, 16

    key = jax.random.PRNGKey(0)
    kx, k1, kb1, k2, kb2 = jax.random.split(key, 5)

    fan1 = C * 3 * 3
    fan2 = C * 1 * 1
    x_nchw = jax.random.normal(kx, (B, C, H, W), dtype=jnp.float32)
    w1 = jax.random.uniform(k1, (3, 3, C, C), jnp.float32,
                            -1.0 / np.sqrt(fan1), 1.0 / np.sqrt(fan1))
    b1 = jax.random.uniform(kb1, (C,), jnp.float32,
                            -1.0 / np.sqrt(fan1), 1.0 / np.sqrt(fan1))
    w2 = jax.random.uniform(k2, (C, C), jnp.float32,
                            -1.0 / np.sqrt(fan2), 1.0 / np.sqrt(fan2))
    b2 = jax.random.uniform(kb2, (C,), jnp.float32,
                            -1.0 / np.sqrt(fan2), 1.0 / np.sqrt(fan2))

    # f32 path (default): tight correctness check vs a pure-JAX reference.
    out = jax.block_until_ready(residual_block_nchw(x_nchw, w1, b1, w2, b2))
    x_nhwc = jnp.transpose(x_nchw, (0, 2, 3, 1))
    ref = jnp.transpose(ref_forward_nhwc(x_nhwc, w1, b1, w2, b2), (0, 3, 1, 2))
    np.testing.assert_allclose(np.asarray(out), np.asarray(ref),
                               rtol=1e-4, atol=1e-4)

    # bf16 MXU-operand path (v6e/v7x recommendation): f32 accumulation,
    # elementwise math stays f32 -> loose tolerance only from operand rounding.
    out_bf16 = jax.block_until_ready(
        residual_block_nchw(x_nchw, w1, b1, w2, b2,
                            matmul_dtype=jnp.bfloat16))
    np.testing.assert_allclose(np.asarray(out_bf16), np.asarray(ref),
                               rtol=5e-2, atol=5e-2)

    print("KERNEL_OK")
</pallas_src>

<mosaic_0001>
module attributes {stable_mosaic.version = 11 : i64} {
  func.func @_residual_block_kernel(%arg0: i32, %arg1: memref<16x64xf32, #tpu.memory_space<vmem>>, %arg2: memref<192x64xf32, #tpu.memory_space<vmem>>, %arg3: memref<1x64xf32, #tpu.memory_space<vmem>>, %arg4: memref<64x64xf32, #tpu.memory_space<vmem>>, %arg5: memref<1x64xf32, #tpu.memory_space<vmem>>, %arg6: memref<16x64xf32, #tpu.memory_space<vmem>>, %arg7: memref<16x192xf32, #tpu.memory_space<vmem>>) attributes {dimension_semantics = [#tpu.dimension_semantics<parallel>], iteration_bounds = array<i64: 2>, scalar_prefetch = 0 : i64, scratch_operands = 1 : i64, tpu.core_type = #tpu.core_type<tc>, window_params = [{transform_indices = @transform_0, window_bounds = array<i64: 16, 64>}, {pipeline_mode = #tpu.pipeline_mode<synchronous>, transform_indices = @transform_1, window_bounds = array<i64: 192, 64>}, {pipeline_mode = #tpu.pipeline_mode<synchronous>, transform_indices = @transform_2, window_bounds = array<i64: 1, 64>}, {pipeline_mode = #tpu.pipeline_mode<synchronous>, transform_indices = @transform_3, window_bounds = array<i64: 64, 64>}, {pipeline_mode = #tpu.pipeline_mode<synchronous>, transform_indices = @transform_4, window_bounds = array<i64: 1, 64>}, {transform_indices = @transform_5, window_bounds = array<i64: 16, 64>}]} {
    %c0 = arith.constant 0 : index
    %c0_0 = arith.constant 0 : index
    %0 = vector.load %arg1[%c0, %c0_0] : memref<16x64xf32, #tpu.memory_space<vmem>>, vector<16x64xf32>
    %cst = arith.constant 0.000000e+00 : f32
    %1 = vector.broadcast %cst : f32 to vector<16x64xf32>
    %2 = arith.maximumf %0, %1 : vector<16x64xf32>
    %cst_1 = arith.constant 0.000000e+00 : f32
    %3 = vector.broadcast %cst_1 : f32 to vector<1x64xf32>
    %c0_2 = arith.constant 0 : index
    %c64 = arith.constant 64 : index
    %4 = vector.load %arg7[%c0_2, %c64] : memref<16x192xf32, #tpu.memory_space<vmem>>, vector<16x64xf32>
    tpu.vector_store %arg7[%c0_2, %c64], %2 {strides = array<i32>} : memref<16x192xf32, #tpu.memory_space<vmem>>, vector<16x64xf32>,
    %c0_3 = arith.constant 0 : index
    %c0_4 = arith.constant 0 : index
    %5 = vector.load %arg7[%c0_3, %c0_4] : memref<16x192xf32, #tpu.memory_space<vmem>>, vector<1x64xf32>
    tpu.vector_store %arg7[%c0_3, %c0_4], %3 {strides = array<i32>} : memref<16x192xf32, #tpu.memory_space<vmem>>, vector<1x64xf32>,
    %6 = vector.extract_strided_slice %2 {offsets = [0, 0], sizes = [15, 64], strides = [1, 1]} : vector<16x64xf32> to vector<15x64xf32>
    %c1 = arith.constant 1 : index
    %c0_5 = arith.constant 0 : index
    %7 = vector.load %arg7[%c1, %c0_5] : memref<16x192xf32, #tpu.memory_space<vmem>>, vector<15x64xf32>
    tpu.vector_store %arg7[%c1, %c0_5], %6 {strides = array<i32>} : memref<16x192xf32, #tpu.memory_space<vmem>>, vector<15x64xf32>,
    %8 = vector.extract_strided_slice %2 {offsets = [1, 0], sizes = [15, 64], strides = [1, 1]} : vector<16x64xf32> to vector<15x64xf32>
    %c0_6 = arith.constant 0 : index
    %c128 = arith.constant 128 : index
    %9 = vector.load %arg7[%c0_6, %c128] : memref<16x192xf32, #tpu.memory_space<vmem>>, vector<15x64xf32>
    tpu.vector_store %arg7[%c0_6, %c128], %8 {strides = array<i32>} : memref<16x192xf32, #tpu.memory_space<vmem>>, vector<15x64xf32>,
    %c15 = arith.constant 15 : index
    %c128_7 = arith.constant 128 : index
    %10 = vector.load %arg7[%c15, %c128_7] : memref<16x192xf32, #tpu.memory_space<vmem>>, vector<1x64xf32>
    tpu.vector_store %arg7[%c15, %c128_7], %3 {strides = array<i32>} : memref<16x192xf32, #tpu.memory_space<vmem>>, vector<1x64xf32>,
    %c0_8 = arith.constant 0 : index
    %c0_9 = arith.constant 0 : index
    %11 = vector.load %arg7[%c0_8, %c0_9] : memref<16x192xf32, #tpu.memory_space<vmem>>, vector<16x192xf32>
    %c0_10 = arith.constant 0 : index
    %c0_11 = arith.constant 0 : index
    %12 = vector.load %arg2[%c0_10, %c0_11] : memref<192x64xf32, #tpu.memory_space<vmem>>, vector<192x64xf32>
    %cst_12 = arith.constant dense<0.000000e+00> : vector<16x64xf32>
    %13 = tpu.matmul %11, %12, %cst_12 {dimension_numbers = #tpu.dot_dimension_numbers<[1], [0], [0], [1], [0, 0, 1, 1], [], []>} : vector<16x192xf32>, vector<192x64xf32>, vector<16x64xf32> -> vector<16x64xf32>
    %14 = tpu.iota {dimensions = array<i32: 0>} : vector<16x64xi32>
    %c16_i32 = arith.constant 16 : i32
    %c0_i32 = arith.constant 0 : i32
    %15 = arith.cmpi eq, %c16_i32, %c0_i32 : i32
    %c1_i32 = arith.constant 1 : i32
    %16 = arith.select %15, %c1_i32, %c16_i32 : i32
    %17 = vector.broadcast %16 : i32 to vector<16x64xi32>
    %18 = arith.remsi %14, %17 : vector<16x64xi32>
    %c0_i32_13 = arith.constant 0 : i32
    %19 = vector.broadcast %c0_i32_13 : i32 to vector<16x64xi32>
    %20 = arith.cmpi ne, %18, %19 : vector<16x64xi32>
    %c0_i32_14 = arith.constant 0 : i32
    %21 = vector.broadcast %c0_i32_14 : i32 to vector<16x64xi32>
    %22 = arith.cmpi slt, %18, %21 : vector<16x64xi32>
    %c0_i32_15 = arith.constant 0 : i32
    %23 = arith.cmpi slt, %16, %c0_i32_15 : i32
    %24 = vector.broadcast %23 : i1 to vector<16x64xi1>
    %25 = vector.broadcast %24 : vector<16x64xi1> to vector<16x64xi1>
    %26 = arith.xori %22, %25 : vector<16x64xi1>
    %27 = arith.andi %26, %20 : vector<16x64xi1>
    %28 = vector.broadcast %16 : i32 to vector<16x64xi32>
    %29 = arith.addi %18, %28 : vector<16x64xi32>
    %30 = arith.select %27, %29, %18 : vector<16x64xi1>, vector<16x64xi32>
    %c0_i32_16 = arith.constant 0 : i32
    %31 = vector.broadcast %c0_i32_16 : i32 to vector<16x64xi32>
    %32 = arith.cmpi sgt, %30, %31 : vector<16x64xi32>
    %c15_i32 = arith.constant 15 : i32
    %33 = vector.broadcast %c15_i32 : i32 to vector<16x64xi32>
    %34 = arith.cmpi slt, %30, %33 : vector<16x64xi32>
    %35 = arith.andi %32, %34 : vector<16x64xi1>
    %c0_17 = arith.constant 0 : index
    %c0_18 = arith.constant 0 : index
    %36 = vector.load %arg3[%c0_17, %c0_18] : memref<1x64xf32, #tpu.memory_space<vmem>>, vector<1x64xf32>
    %37 = vector.broadcast %36 : vector<1x64xf32> to vector<16x64xf32>
    %38 = arith.addf %13, %37 : vector<16x64xf32>
    %cst_19 = arith.constant 0.000000e+00 : f32
    %39 = vector.broadcast %cst_19 : f32 to vector<16x64xf32>
    %40 = arith.maximumf %38, %39 : vector<16x64xf32>
    %cst_20 = arith.constant 0.000000e+00 : f32
    %41 = vector.broadcast %cst_20 : f32 to vector<16x64xf32>
    %42 = arith.select %35, %40, %41 : vector<16x64xi1>, vector<16x64xf32>
    %c0_21 = arith.constant 0 : index
    %c0_22 = arith.constant 0 : index
    %43 = vector.load %arg4[%c0_21, %c0_22] : memref<64x64xf32, #tpu.memory_space<vmem>>, vector<64x64xf32>
    %cst_23 = arith.constant dense<0.000000e+00> : vector<16x64xf32>
    %44 = tpu.matmul %42, %43, %cst_23 {dimension_numbers = #tpu.dot_dimension_numbers<[1], [0], [0], [1], [0, 0, 1, 1], [], []>} : vector<16x64xf32>, vector<64x64xf32>, vector<16x64xf32> -> vector<16x64xf32>
    %c0_24 = arith.constant 0 : index
    %c0_25 = arith.constant 0 : index
    %45 = vector.load %arg5[%c0_24, %c0_25] : memref<1x64xf32, #tpu.memory_space<vmem>>, vector<1x64xf32>
    %46 = vector.broadcast %45 : vector<1x64xf32> to vector<16x64xf32>
    %47 = arith.addf %44, %46 : vector<16x64xf32>
    %48 = arith.addf %0, %47 : vector<16x64xf32>
    %c0_26 = arith.constant 0 : index
    %c0_27 = arith.constant 0 : index
    %49 = vector.load %arg6[%c0_26, %c0_27] : memref<16x64xf32, #tpu.memory_space<vmem>>, vector<16x64xf32>
    tpu.vector_store %arg6[%c0_26, %c0_27], %48 {strides = array<i32>} : memref<16x64xf32, #tpu.memory_space<vmem>>, vector<16x64xf32>,
    return
  }
  func.func @transform_0(%arg0: i32) -> (i32, i32) {
    %c0_i32 = arith.constant 0 : i32
    %c0_i32_0 = arith.constant 0 : i32
    return %arg0, %c0_i32 : i32, i32
  }
  func.func @transform_1(%arg0: i32) -> (i32, i32) {
    %c0_i32 = arith.constant 0 : i32
    %c0_i32_0 = arith.constant 0 : i32
    %c0_i32_1 = arith.constant 0 : i32
    return %c0_i32, %c0_i32_0 : i32, i32
  }
  func.func @transform_2(%arg0: i32) -> (i32, i32) {
    %c0_i32 = arith.constant 0 : i32
    %c0_i32_0 = arith.constant 0 : i32
    %c0_i32_1 = arith.constant 0 : i32
    return %c0_i32, %c0_i32_0 : i32, i32
  }
  func.func @transform_3(%arg0: i32) -> (i32, i32) {
    %c0_i32 = arith.constant 0 : i32
    %c0_i32_0 = arith.constant 0 : i32
    %c0_i32_1 = arith.constant 0 : i32
    return %c0_i32, %c0_i32_0 : i32, i32
  }
  func.func @transform_4(%arg0: i32) -> (i32, i32) {
    %c0_i32 = arith.constant 0 : i32
    %c0_i32_0 = arith.constant 0 : i32
    %c0_i32_1 = arith.constant 0 : i32
    return %c0_i32, %c0_i32_0 : i32, i32
  }
  func.func @transform_5(%arg0: i32) -> (i32, i32) {
    %c0_i32 = arith.constant 0 : i32
    %c0_i32_0 = arith.constant 0 : i32
    return %arg0, %c0_i32 : i32, i32
  }
}

</mosaic_0001>

<llo_original>
// kernel: tpu_custom_call.1
$region0: #{tpu_custom_call.1}
  #allocation0 [shape = 'u32[]', space=smem, size = 0x4, offset = 0x4, fixed_abs, tag = 'smem constant byte address 0x4 - core index']
  #allocation1 [shape = 'u32[144,128]{1,0:T(1,128)}', space=vmem, size = 0x12000, scoped, tag = 'internal scratch']
  #allocation2 [shape = 'f32[16,192]{1,0:T(8,128)}', space=vmem, size = 0x4000, scoped, tag = 'scratch operand']
  %s0 = inlined_call_operand.vmem [shape: f32[32,64], index: 0, kind: input, shape index: {}]
  %s1 = inlined_call_operand.vmem [shape: f32[192,64], index: 1, kind: input, shape index: {}]
  %s2 = inlined_call_operand.vmem [shape: f32[1,64], index: 2, kind: input, shape index: {}]
  %s3 = inlined_call_operand.vmem [shape: f32[64,64], index: 3, kind: input, shape index: {}]
  %s4 = inlined_call_operand.vmem [shape: f32[1,64], index: 4, kind: input, shape index: {}]
  %s5 = inlined_call_operand.hbm [shape: f32[32,64], index: 5, kind: output, shape index: {}]
  %s6 = sld [smem:[#allocation0]]
  $region53: #{tpu_custom_call.1} parent=0
    _
  %s8 = ssub.s32 1, %s6
  %s9 = scalar_select 0, %s8, %s6
  $region1: #{tpu_custom_call.1} parent=0
    #allocation3 [shape = 'u8[16384]{0}', space=vmem, size = 0x4000, scoped, tag = 'output window, operand 0']
    #allocation4 [shape = 's32[2]{0}', space=sflag, size = 0x8, scoped, tag = 'scoped memory for tpu_custom_call.1']
    %10 = vsyncpa [#allocation4], 0
    %s11 = scalar_lea.sflag [#allocation4], 1
    %12 = vsyncpa %s11, 0
    loop: start=0, step=1, limit=4
    $region2: #{tpu_custom_call.1} parent=1 // loop_pre_header
      _
    $region3: #{tpu_custom_call.1} parent=1 // loop_header
      %s14 = sphi 0, %s18
      %p15 = scmp.ge.s32.totalorder %s14, 4
      %s24 = sphi 0, %s26
      %s27 = sphi 0, %s24
      %s28 = sphi 0, %s27
      %s44 = sphi 0, %s28
      %s48 = sphi 0, %s48
      %s50 = sphi 0, %s48
      %s51 = sphi 0, %s50
      %s65 = sphi 0, %s51
      %s69 = sphi 0, %s69
      %s71 = sphi 0, %s69
      %s72 = sphi 0, %s71
      %s86 = sphi 0, %s72
      %s90 = sphi 0, %s90
      %s92 = sphi 0, %s90
      %s93 = sphi 0, %s92
      %s107 = sphi 0, %s93
      %s111 = sphi 0, %s111
      %s113 = sphi 0, %s111
      %s114 = sphi 0, %s113
      %s128 = sphi 0, %s114
      %s134 = sphi 0, %s136
      %s137 = sphi 0, %s134
      %s138 = sphi 0, %s137
      %s154 = sphi 0, %s138
    $region4: #{tpu_custom_call.1} parent=1 // loop_header_branch
      %17 = sbr.rel (%p15) target = $region8
    $region5: #{tpu_custom_call.1} parent=1 // loop_body
      %s19 = ssub.s32 %s14, 1
      %s20 = ssub.s32 %s14, 2
      %s21 = sadd.s32 %s14, 1
      %s22 = ssub.s32 %s14, %s21
      %p23 = scmp.eq.s32.totalorder %s22, 0
      %s25 = sadd.s32 %s24, 1
      %s26 = scalar_select %p23, %s24, %s25
      %p29 = pneg %p23
      %p30 = scmp.eq.s32.totalorder %s14, 1
      %p31 = por %p29, %p30
      %p32 = scmp.ne.s32.totalorder %s24, %s27
      %p33 = scmp.eq.s32.totalorder %s14, 0
      %p34 = por %p32, %p33
      %p35 = scmp.ne.s32.totalorder %s24, %s27
      %p36 = scmp.eq.s32.totalorder %s19, 1
      %p37 = por %p35, %p36
      %p38 = scmp.ne.s32.totalorder %s27, %s28
      %p39 = scmp.eq.s32.totalorder %s19, 0
      %p40 = por %p38, %p39
      %p41 = scmp.ne.s32.totalorder %s27, %s28
      %p42 = scmp.eq.s32.totalorder %s20, 1
      %p43 = por %p41, %p42
      %p45 = scmp.ne.s32.totalorder %s28, %s44
      %p46 = scmp.eq.s32.totalorder %s20, 0
      %p47 = por %p45, %p46
      %s49 = sadd.s32 %s48, 1
      %p52 = scmp.eq.s32.totalorder %s14, 1
      %p53 = scmp.ne.s32.totalorder %s48, %s50
      %p54 = scmp.eq.s32.totalorder %s14, 0
      %p55 = por %p53, %p54
      %p56 = scmp.ne.s32.totalorder %s48, %s50
      %p57 = scmp.eq.s32.totalorder %s19, 1
      %p58 = por %p56, %p57
      %p59 = scmp.ne.s32.totalorder %s50, %s51
      %p60 = scmp.eq.s32.totalorder %s19, 0
      %p61 = por %p59, %p60
      %p62 = scmp.ne.s32.totalorder %s50, %s51
      %p63 = scmp.eq.s32.totalorder %s20, 1
      %p64 = por %p62, %p63
      %p66 = scmp.ne.s32.totalorder %s51, %s65
      %p67 = scmp.eq.s32.totalorder %s20, 0
      %p68 = por %p66, %p67
      %s70 = sadd.s32 %s69, 1
      %p73 = scmp.eq.s32.totalorder %s14, 1
      %p74 = scmp.ne.s32.totalorder %s69, %s71
      %p75 = scmp.eq.s32.totalorder %s14, 0
      %p76 = por %p74, %p75
      %p77 = scmp.ne.s32.totalorder %s69, %s71
      %p78 = scmp.eq.s32.totalorder %s19, 1
      %p79 = por %p77, %p78
      %p80 = scmp.ne.s32.totalorder %s71, %s72
      %p81 = scmp.eq.s32.totalorder %s19, 0
      %p82 = por %p80, %p81
      %p83 = scmp.ne.s32.totalorder %s71, %s72
      %p84 = scmp.eq.s32.totalorder %s20, 1
      %p85 = por %p83, %p84
      %p87 = scmp.ne.s32.totalorder %s72, %s86
      %p88 = scmp.eq.s32.totalorder %s20, 0
      %p89 = por %p87, %p88
      %s91 = sadd.s32 %s90, 1
      %p94 = scmp.eq.s32.totalorder %s14, 1
      %p95 = scmp.ne.s32.totalorder %s90, %s92
      %p96 = scmp.eq.s32.totalorder %s14, 0
      %p97 = por %p95, %p96
      %p98 = scmp.ne.s32.totalorder %s90, %s92
      %p99 = scmp.eq.s32.totalorder %s19, 1
      %p100 = por %p98, %p99
      %p101 = scmp.ne.s32.totalorder %s92, %s93
      %p102 = scmp.eq.s32.totalorder %s19, 0
      %p103 = por %p101, %p102
      %p104 = scmp.ne.s32.totalorder %s92, %s93
      %p105 = scmp.eq.s32.totalorder %s20, 1
      %p106 = por %p104, %p105
      %p108 = scmp.ne.s32.totalorder %s93, %s107
      %p109 = scmp.eq.s32.totalorder %s20, 0
      %p110 = por %p108, %p109
      %s112 = sadd.s32 %s111, 1
      %p115 = scmp.eq.s32.totalorder %s14, 1
      %p116 = scmp.ne.s32.totalorder %s111, %s113
      %p117 = scmp.eq.s32.totalorder %s14, 0
      %p118 = por %p116, %p117
      %p119 = scmp.ne.s32.totalorder %s111, %s113
      %p120 = scmp.eq.s32.totalorder %s19, 1
      %p121 = por %p119, %p120
      %p122 = scmp.ne.s32.totalorder %s113, %s114
      %p123 = scmp.eq.s32.totalorder %s19, 0
      %p124 = por %p122, %p123
      %p125 = scmp.ne.s32.totalorder %s113, %s114
      %p126 = scmp.eq.s32.totalorder %s20, 1
      %p127 = por %p125, %p126
      %p129 = scmp.ne.s32.totalorder %s114, %s128
      %p130 = scmp.eq.s32.totalorder %s20, 0
      %p131 = por %p129, %p130
      %s132 = ssub.s32 %s14, %s21
      %p133 = scmp.eq.s32.totalorder %s132, 0
      %s135 = sadd.s32 %s134, 1
      %s136 = scalar_select %p133, %s134, %s135
      %p139 = pneg %p133
      %p140 = scmp.eq.s32.totalorder %s14, 1
      %p141 = por %p139, %p140
      %p142 = scmp.ne.s32.totalorder %s134, %s137
      %p143 = scmp.eq.s32.totalorder %s14, 0
      %p144 = por %p142, %p143
      %p145 = scmp.ne.s32.totalorder %s134, %s137
      %p146 = scmp.eq.s32.totalorder %s19, 1
      %p147 = por %p145, %p146
      %p148 = scmp.ne.s32.totalorder %s137, %s138
      %p149 = scmp.eq.s32.totalorder %s19, 0
      %p150 = por %p148, %p149
      %p151 = scmp.ne.s32.totalorder %s137, %s138
      %p152 = scmp.eq.s32.totalorder %s20, 1
      %p153 = por %p151, %p152
      %p155 = scmp.ne.s32.totalorder %s138, %s154
      %p156 = scmp.eq.s32.totalorder %s20, 0
      %p157 = por %p155, %p156
      %p158 = scmp.le.s32.totalorder 1, %s14
      %p159 = scmp.lt.s32.totalorder %s14, 3
      %p160 = pnand %p158, %p159
      %p161 = pneg %p160
      // Predicated region
      $region9: #{tpu_custom_call.1} parent=5 // pred_check
        _
      $region10: #{tpu_custom_call.1} parent=5 // pred_check_branch
        %163 = sbr.rel (%p160) target = $region12
      $region11: #{tpu_custom_call.1} parent=5 // pred_region
        %s164 = ssub.s32 %s14, 1
        // Predicated region
        $region13: #{tpu_custom_call.1} parent=11 // pred_check
          %p165 = pneg %p61
        $region14: #{tpu_custom_call.1} parent=11 // pred_check_branch
          %167 = sbr.rel (%p165) target = $region16
        $region15: #{tpu_custom_call.1} parent=11 // pred_region
          _
        $region16: #{tpu_custom_call.1} parent=11 // pred_fallthru
          _
        // Predicated region
        $region17: #{tpu_custom_call.1} parent=11 // pred_check
          %p168 = pneg %p82
        $region18: #{tpu_custom_call.1} parent=11 // pred_check_branch
          %170 = sbr.rel (%p168) target = $region20
        $region19: #{tpu_custom_call.1} parent=11 // pred_region
          _
        $region20: #{tpu_custom_call.1} parent=11 // pred_fallthru
          _
        // Predicated region
        $region21: #{tpu_custom_call.1} parent=11 // pred_check
          %p171 = pneg %p103
        $region22: #{tpu_custom_call.1} parent=11 // pred_check_branch
          %173 = sbr.rel (%p171) target = $region24
        $region23: #{tpu_custom_call.1} parent=11 // pred_region
          _
        $region24: #{tpu_custom_call.1} parent=11 // pred_fallthru
          _
        // Predicated region
        $region25: #{tpu_custom_call.1} parent=11 // pred_check
          %p174 = pneg %p124
        $region26: #{tpu_custom_call.1} parent=11 // pred_check_branch
          %176 = sbr.rel (%p174) target = $region28
        $region27: #{tpu_custom_call.1} parent=11 // pred_region
          _
        $region28: #{tpu_custom_call.1} parent=11 // pred_fallthru
          _
      $region12: #{tpu_custom_call.1} parent=5 // pred_fallthru
        _
      %p177 = scmp.lt.s32.totalorder %s14, 2
      // Predicated region
      $region29: #{tpu_custom_call.1} parent=5 // pred_check
        %p178 = pneg %p177
      $region30: #{tpu_custom_call.1} parent=5 // pred_check_branch
        %180 = sbr.rel (%p178) target = $region32
      $region31: #{tpu_custom_call.1} parent=5 // pred_region
        // Predicated region
        $region33: #{tpu_custom_call.1} parent=31 // pred_check
          %p181 = pneg %p34
        $region34: #{tpu_custom_call.1} parent=31 // pred_check_branch
          %183 = sbr.rel (%p181) target = $region36
        $region35: #{tpu_custom_call.1} parent=31 // pred_region
          %s184 = smul.u32 2, %s14
          %p185 = scmp.lt.s32.totalorder %s184, 3
          %s186 = scalar_select %p185, %s184, 3
          %s187 = smul.addr %s186, 8
          %s188 = scalar_lea.vmem %s0, %s187
          %s189 = smul.u32 2, %s14
        $region36: #{tpu_custom_call.1} parent=31 // pred_fallthru
          _
      $region32: #{tpu_custom_call.1} parent=5 // pred_fallthru
        _
      %p190 = scmp.le.s32.totalorder 1, %s14
      %p191 = scmp.lt.s32.totalorder %s14, 3
      %p192 = pnand %p190, %p191
      %p193 = pneg %p192
      // Predicated region
      $region37: #{tpu_custom_call.1} parent=5 // pred_check
        _
      $region38: #{tpu_custom_call.1} parent=5 // pred_check_branch
        %195 = sbr.rel (%p192) target = $region40
      $region39: #{tpu_custom_call.1} parent=5 // pred_region
        %s196 = ssub.s32 %s14, 1
        %s197 = smul.u32 2, %s19
        %p198 = scmp.lt.s32.totalorder %s197, 3
        %s199 = scalar_select %p198, %s197, 3
        %s200 = smul.addr %s199, 8
        %s201 = scalar_lea.vmem %s0, %s200
        %p202 = pneg %p40
        %p203 = pneg %p37
        %p204 = pneg %p61
        %p205 = pneg %p58
        %p206 = pneg %p82
        %p207 = pneg %p79
        %p208 = pneg %p103
        %p209 = pneg %p100
        %p210 = pneg %p124
        %p211 = pneg %p121
        %p212 = pneg %p150
        %p213 = pneg %p147
        %s214 = sand.u32 %s137, 1
        %s215 = scalar_lea.sflag [#allocation4], %s214
        %s216 = sand.u32 %s137, 1
        %s217 = smul.addr %s216, 16
        %s218 = scalar_lea.vmem [#allocation3], %s217
        %s219 = smul.u32 2, %s19
        %p220 = scmp.lt.s32.totalorder %s219, 3
        %s221 = scalar_select %p220, %s219, 3
        %s222 = smul.addr %s221, 8
        %s223 = scalar_lea.vmem %s0, %s222
        %s224 = smul.u32 2, %s19
        %s225 = smul.u32 2, %s19
        %v226 = vld [vmem:[%s223] sm:$0xff]
        %v227 = vld [vmem:[%s223 + $0x8] sm:$0xff]
        %v228 = vmax.f32 %v226, 0.0
        %v229 = vmax.f32 %v227, 0.0
        %232 = vrot.lane.b32.xlu0 %v228, 64
        %v233 = vpop.permute.xlu0 %232
        %234 = vrot.lane.b32.xlu0 %v229, 64
        %v235 = vpop.permute.xlu0 %234
        %vm238 = vcmask 1048064
        %239 = vst.msk [vmem:[#allocation2] sm:$0xff] %vm238, %v233
        %240 = vst.msk [vmem:[#allocation2 + $0x10] sm:$0xff] %vm238, %v235
        %vm241 = vcmask 516096
        %242 = vst.msk [vmem:[#allocation2] sm:$0x1] %vm241, 0.0
        %vm243 = vcmask 1040384
        %v244 = vrot.slane %v228, 7
        %v245 = vrot.slane %v229, 7
        %v246 = vsel %vm243, %v244, %v245
        %vm249 = vcmask 523265
        %250 = vst.msk [vmem:[#allocation2] sm:$0xfe] %vm249, %v244
        %vm251 = vcmask 523264
        %252 = vst.msk [vmem:[#allocation2 + $0x10] sm:$0xff] %vm251, %v246
        %vm253 = vcmask 1046528
        %v254 = vrot.slane %v228, 1
        %v255 = vrot.slane %v229, 1
        %v256 = vsel %vm253, %v254, %v255
        %259 = vst.msk [vmem:[#allocation2 + $0x8] sm:$0xff] %vm251, %v256
        %vm260 = vcmask 522240
        %261 = vst.msk [vmem:[#allocation2 + $0x18] sm:$0x7f] %vm260, %v255
        %262 = vst.msk [vmem:[#allocation2 + $0x1f] sm:$0x1] %vm241, 0.0
        %v263 = vld [vmem:[#allocation2] sm:$0xff]
        %v264 = vld [vmem:[#allocation2 + $0x8] sm:$0xff]
        %v265 = vld [vmem:[#allocation2 + $0x10] sm:$0xff]
        %v266 = vld [vmem:[#allocation2 + $0x18] sm:$0xff]
        %v267 = vld [vmem:[%s1] sm:$0xff]
        %v268 = vld [vmem:[%s1 + $0x8] sm:$0xff]
        %v269 = vld [vmem:[%s1 + $0x10] sm:$0xff]
        %v270 = vld [vmem:[%s1 + $0x18] sm:$0xff]
        %v271 = vld [vmem:[%s1 + $0x20] sm:$0xff]
        %v272 = vld [vmem:[%s1 + $0x28] sm:$0xff]
        %v273 = vld [vmem:[%s1 + $0x30] sm:$0xff]
        %v274 = vld [vmem:[%s1 + $0x38] sm:$0xff]
        %v275 = vld [vmem:[%s1 + $0x40] sm:$0xff]
        %v276 = vld [vmem:[%s1 + $0x48] sm:$0xff]
        %v277 = vld [vmem:[%s1 + $0x50] sm:$0xff]
        %v278 = vld [vmem:[%s1 + $0x58] sm:$0xff]
        %v279 = vld [vmem:[%s1 + $0x60] sm:$0xff]
        %v280 = vld [vmem:[%s1 + $0x68] sm:$0xff]
        %v281 = vld [vmem:[%s1 + $0x70] sm:$0xff]
        %v282 = vld [vmem:[%s1 + $0x78] sm:$0xff]
        %v283 = vld [vmem:[%s1 + $0x80] sm:$0xff]
        %v284 = vld [vmem:[%s1 + $0x88] sm:$0xff]
        %v285 = vld [vmem:[%s1 + $0x90] sm:$0xff]
        %v286 = vld [vmem:[%s1 + $0x98] sm:$0xff]
        %v287 = vld [vmem:[%s1 + $0xa0] sm:$0xff]
        %v288 = vld [vmem:[%s1 + $0xa8] sm:$0xff]
        %v289 = vld [vmem:[%s1 + $0xb0] sm:$0xff]
        %v290 = vld [vmem:[%s1 + $0xb8] sm:$0xff]
        %v291 = vlaneseq
        %v292 = vshrl.u32 %v291, 7
        %v293 = vadd.s32 %v292, 8
        %vm294 = vcmp.lt.s32.totalorder %v292, 0
        %v295 = vsub.s32 0, %v292
        %v296 = vsel %vm294, %v295, %v292
        %v297 = vshrl.u32 %v296, 4
        %v298 = vand.u32 %v296, 15
        %v299 = vsub.s32 0, %v298
        %v300 = vsel %vm294, %v299, %v298
        %vm301 = vcmp.lt.s32.totalorder %v293, 0
        %v302 = vsub.s32 0, %v293
        %v303 = vsel %vm301, %v302, %v293
        %v304 = vshrl.u32 %v303, 4
        %v305 = vand.u32 %v303, 15
        %v306 = vsub.s32 0, %v305
        %v307 = vsel %vm301, %v306, %v305
        %vm308 = vcmp.ne.s32.totalorder %v300, 0
        %vm309 = vcmp.ne.s32.totalorder %v307, 0
        %vm310 = vcmp.lt.s32.totalorder %v300, 0
        %vm311 = vcmp.lt.s32.totalorder %v307, 0
        %vm312 = vmand %vm310, %vm308
        %vm313 = vmand %vm311, %vm309
        %v314 = vadd.s32 %v300, 16
        %v315 = vadd.s32 %v307, 16
        %v316 = vsel %vm312, %v314, %v300
        %v317 = vsel %vm313, %v315, %v307
        %vm318 = vcmp.gt.s32.totalorder %v316, 0
        %vm319 = vcmp.gt.s32.totalorder %v317, 0
        %vm320 = vcmp.lt.s32.totalorder %v316, 15
        %vm321 = vcmp.lt.s32.totalorder %v317, 15
        %vm322 = vmand %vm318, %vm320
        %vm323 = vmand %vm319, %vm321
        %v324 = vld [vmem:[%s2] sm:$0x1]
        %v326 = vlaneseq
        %v327 = vshrl.u32 %v326, 7
        %v328 = vsub.s32 0, %v327
        %v329 = vrot.slane %v324, %v328
        %v332 = vsel %vm251, %v264, 0
        %v335 = vsel %vm251, %v266, 0
        %337 = vmatprep.subr.mxu0 0.0
        %338 = vmatpush1.msra.mxu0 %v267
        %339 = vmatprep.subr.mxu0 0.0
        %340 = vmatpush1.msra.mxu0 %v268
        %341 = vmatprep.subr.mxu0 0.0
        %342 = vmatpush1.msra.mxu0 %v269
        %343 = vmatprep.subr.mxu0 0.0
        %344 = vmatpush1.msra.mxu0 %v270
        %345 = vmatprep.subr.mxu0 0.0
        %346 = vmatpush1.msra.mxu0 %v271
        %347 = vmatprep.subr.mxu0 0.0
        %348 = vmatpush1.msra.mxu0 %v272
        %349 = vmatprep.subr.mxu0 0.0
        %350 = vmatpush1.msra.mxu0 %v273
        %351 = vmatprep.subr.mxu0 0.0
        %352 = vmatpush1.msra.mxu0 %v274
        %353 = vmatprep.subr.mxu0 0.0
        %354 = vmatpush1.msra.mxu0 %v275
        %355 = vmatprep.subr.mxu0 0.0
        %356 = vmatpush1.msra.mxu0 %v276
        %357 = vmatprep.subr.mxu0 0.0
        %358 = vmatpush1.msra.mxu0 %v277
        %359 = vmatprep.subr.mxu0 0.0
        %360 = vmatpush1.msra.mxu0 %v278
        %361 = vmatprep.subr.mxu0 0.0
        %362 = vmatpush1.msra.mxu0 %v279
        %363 = vmatprep.subr.mxu0 0.0
        %364 = vmatpush1.msra.mxu0 %v280
        %365 = vmatprep.subr.mxu0 0.0
        %366 = vmatpush1.msra.mxu0 %v281
        %367 = vmatprep.subr.mxu0 0.0
        %368 = vmatpush1.msra.mxu0 %v282
        %369 = vmatprep.subr.mxu0 0.0
        %370 = vmatpush1.msra.mxu0 %v283
        %371 = vmatprep.subr.mxu0 0.0
        %372 = vmatpush1.msra.mxu0 %v284
        %373 = vmatprep.subr.mxu0 0.0
        %374 = vmatpush1.msra.mxu0 %v285
        %375 = vmatprep.subr.mxu0 0.0
        %376 = vmatpush1.msra.mxu0 %v286
        %377 = vmatprep.subr.mxu0 0.0
        %378 = vmatpush1.msra.mxu0 %v287
        %379 = vmatprep.subr.mxu0 0.0
        %380 = vmatpush1.msra.mxu0 %v288
        %381 = vmatprep.subr.mxu0 0.0
        %382 = vmatpush1.msra.mxu0 %v289
        %383 = vmatprep.subr.mxu0 0.0
        %384 = vmatpush1.msra.mxu0 %v290
        %385 = vmatprep.subr.mxu0 0.0
        %386 = vmatpush1.msra.mxu0 0.0
        %387 = vmatprep.subr.mxu0 0.0
        %388 = vmatpush1.msra.mxu0 0.0
        %389 = vmatprep.subr.mxu0 0.0
        %390 = vmatpush1.msra.mxu0 0.0
        %391 = vmatprep.subr.mxu0 0.0
        %392 = vmatpush1.msra.mxu0 0.0
        %393 = vmatprep.subr.mxu0 0.0
        %394 = vmatpush1.msra.mxu0 0.0
        %395 = vmatprep.subr.mxu0 0.0
        %396 = vmatpush1.msra.mxu0 0.0
        %397 = vmatprep.subr.mxu0 0.0
        %398 = vmatpush1.msra.mxu0 0.0
        %399 = vmatprep.subr.mxu0 0.0
        %400 = vmatpush1.msra.mxu0 0.0
        %401 = vmatprep.mubr.f32.mxu0 %v332
        %402 = vmatmul.mubr.f32.gmra.mrb[0].mxu0 %v263
        %v403 = vpop.f32.mrb[0].mxu0
        %v404 = vadd.f32 %v329, %v403
        %v405 = vpop.f32.mrb[0].mxu0
        %406 = vmatprep.mubr.f32.mxu0 %v335
        %407 = vmatmul.mubr.f32.gmra.mrb[0].mxu0 %v265
        %v408 = vpop.f32.mrb[0].mxu0
        %v409 = vadd.f32 %v329, %v408
        %v410 = vpop.f32.mrb[0].mxu0
        %411 = vdwg.mxu0
        %v412 = vmax.f32 %v404, 0.0
        %v413 = vmax.f32 %v409, 0.0
        %v414 = vsel %vm322, %v412, 0.0
        %v415 = vsel %vm323, %v413, 0.0
        %v416 = vld [vmem:[%s3] sm:$0xff]
        %v417 = vld [vmem:[%s3 + $0x8] sm:$0xff]
        %v418 = vld [vmem:[%s3 + $0x10] sm:$0xff]
        %v419 = vld [vmem:[%s3 + $0x18] sm:$0xff]
        %v420 = vld [vmem:[%s3 + $0x20] sm:$0xff]
        %v421 = vld [vmem:[%s3 + $0x28] sm:$0xff]
        %v422 = vld [vmem:[%s3 + $0x30] sm:$0xff]
        %v423 = vld [vmem:[%s3 + $0x38] sm:$0xff]
        %v424 = vld [vmem:[%s4] sm:$0x1]
        %v426 = vlaneseq
        %v427 = vshrl.u32 %v426, 7
        %v428 = vsub.s32 0, %v427
        %v429 = vrot.slane %v424, %v428
        %v432 = vsel %vm251, %v414, 0
        %v435 = vsel %vm251, %v415, 0
        %437 = vmatprep.subr.mxu0 0.0
        %438 = vmatpush1.msra.mxu0 %v416
        %439 = vmatprep.subr.mxu0 0.0
        %440 = vmatpush1.msra.mxu0 %v417
        %441 = vmatprep.subr.mxu0 0.0
        %442 = vmatpush1.msra.mxu0 %v418
        %443 = vmatprep.subr.mxu0 0.0
        %444 = vmatpush1.msra.mxu0 %v419
        %445 = vmatprep.subr.mxu0 0.0
        %446 = vmatpush1.msra.mxu0 %v420
        %447 = vmatprep.subr.mxu0 0.0
        %448 = vmatpush1.msra.mxu0 %v421
        %449 = vmatprep.subr.mxu0 0.0
        %450 = vmatpush1.msra.mxu0 %v422
        %451 = vmatprep.subr.mxu0 0.0
        %452 = vmatpush1.msra.mxu0 %v423
        %453 = vmatprep.subr.mxu0 0.0
        %454 = vmatpush1.msra.mxu0 0.0
        %455 = vmatprep.subr.mxu0 0.0
        %456 = vmatpush1.msra.mxu0 0.0
        %457 = vmatprep.subr.mxu0 0.0
        %458 = vmatpush1.msra.mxu0 0.0
        %459 = vmatprep.subr.mxu0 0.0
        %460 = vmatpush1.msra.mxu0 0.0
        %461 = vmatprep.subr.mxu0 0.0
        %462 = vmatpush1.msra.mxu0 0.0
        %463 = vmatprep.subr.mxu0 0.0
        %464 = vmatpush1.msra.mxu0 0.0
        %465 = vmatprep.subr.mxu0 0.0
        %466 = vmatpush1.msra.mxu0 0.0
        %467 = vmatprep.subr.mxu0 0.0
        %468 = vmatpush1.msra.mxu0 0.0
        %469 = vmatprep.subr.mxu0 0.0
        %470 = vmatpush1.msra.mxu0 0.0
        %471 = vmatprep.subr.mxu0 0.0
        %472 = vmatpush1.msra.mxu0 0.0
        %473 = vmatprep.subr.mxu0 0.0
        %474 = vmatpush1.msra.mxu0 0.0
        %475 = vmatprep.subr.mxu0 0.0
        %476 = vmatpush1.msra.mxu0 0.0
        %477 = vmatprep.subr.mxu0 0.0
        %478 = vmatpush1.msra.mxu0 0.0
        %479 = vmatprep.subr.mxu0 0.0
        %480 = vmatpush1.msra.mxu0 0.0
        %481 = vmatprep.subr.mxu0 0.0
        %482 = vmatpush1.msra.mxu0 0.0
        %483 = vmatprep.subr.mxu0 0.0
        %484 = vmatpush1.msra.mxu0 0.0
        %485 = vmatprep.subr.mxu0 0.0
        %486 = vmatpush1.msra.mxu0 0.0
        %487 = vmatprep.subr.mxu0 0.0
        %488 = vmatpush1.msra.mxu0 0.0
        %489 = vmatprep.subr.mxu0 0.0
        %490 = vmatpush1.msra.mxu0 0.0
        %491 = vmatprep.subr.mxu0 0.0
        %492 = vmatpush1.msra.mxu0 0.0
        %493 = vmatprep.subr.mxu0 0.0
        %494 = vmatpush1.msra.mxu0 0.0
        %495 = vmatprep.subr.mxu0 0.0
        %496 = vmatpush1.msra.mxu0 0.0
        %497 = vmatprep.subr.mxu0 0.0
        %498 = vmatpush1.msra.mxu0 0.0
        %499 = vmatprep.subr.mxu0 0.0
        %500 = vmatpush1.msra.mxu0 0.0
        %501 = vmatprep.mubr.f32.mxu0 0.0
        %502 = vmatmul.mubr.f32.gmra.mrb[0].mxu0 %v432
        %v503 = vpop.f32.mrb[0].mxu0
        %v504 = vadd.f32 %v429, %v503
        %v505 = vpop.f32.mrb[0].mxu0
        %506 = vmatprep.mubr.f32.mxu0 0.0
        %507 = vmatmul.mubr.f32.gmra.mrb[0].mxu0 %v435
        %v508 = vpop.f32.mrb[0].mxu0
        %v509 = vadd.f32 %v429, %v508
        %v510 = vpop.f32.mrb[0].mxu0
        %511 = vdwg.mxu0
        %v512 = vadd.f32 %v226, %v504
        %v513 = vadd.f32 %v227, %v509
        %514 = vst.msk [vmem:[%s218] sm:$0xff] %vm251, %v512
        %515 = vst.msk [vmem:[%s218 + $0x8] sm:$0xff] %vm251, %v513
        %s516 = sand.u32 %s137, 1
        %s517 = scalar_lea.sflag [#allocation4], %s516
        %s518 = sand.u32 %s137, 1
        %s519 = smul.addr %s518, 16
        %s520 = scalar_lea.vmem [#allocation3], %s519
        // Predicated region
        $region41: #{tpu_custom_call.1} parent=39 // pred_check
          %p521 = pneg %p147
        $region42: #{tpu_custom_call.1} parent=39 // pred_check_branch
          %523 = sbr.rel (%p521) target = $region44
        $region43: #{tpu_custom_call.1} parent=39 // pred_region
          %s524 = smul.u32 2, %s19
          %s526 = ssub.s32 256, 256
          %527 = vsyncadd %s517, %s526
          %s528 = smul.addr %s524, 128
          %s529 = scalar_lea.hbm %s5, %s528
          %s530 = sshll.u32 %s520, 4
          %s531 = int_to_ptr.vmem [resolvable:$true] %s530
          %536 = dma.vmem_to_hbm [thread:$0]  %s531, 256, %s529, %s517, 128, 128, 8
        $region44: #{tpu_custom_call.1} parent=39 // pred_fallthru
          _
      $region40: #{tpu_custom_call.1} parent=5 // pred_fallthru
        _
      %p537 = scmp.le.s32.totalorder 2, %s14
      // Predicated region
      $region45: #{tpu_custom_call.1} parent=5 // pred_check
        %p538 = pneg %p537
      $region46: #{tpu_custom_call.1} parent=5 // pred_check_branch
        %540 = sbr.rel (%p538) target = $region48
      $region47: #{tpu_custom_call.1} parent=5 // pred_region
        %s541 = ssub.s32 %s14, 2
        // Predicated region
        $region49: #{tpu_custom_call.1} parent=47 // pred_check
          %p542 = pneg %p153
        $region50: #{tpu_custom_call.1} parent=47 // pred_check_branch
          %544 = sbr.rel (%p542) target = $region52
        $region51: #{tpu_custom_call.1} parent=47 // pred_region
          %s545 = sand.u32 %s138, 1
          %s546 = scalar_lea.sflag [#allocation4], %s545
          %s547 = sand.u32 %s138, 1
          %s548 = smul.addr %s547, 16
          %s549 = scalar_lea.vmem [#allocation3], %s548
          %550 = dma.done %s546, 256
        $region52: #{tpu_custom_call.1} parent=47 // pred_fallthru
          _
      $region48: #{tpu_custom_call.1} parent=5 // pred_fallthru
        _
    $region6: #{tpu_custom_call.1} parent=1 // loop_footer
      %s18 = sadd.s32 1, %s14
    $region7: #{tpu_custom_call.1} parent=1 // loop_footer_branch
      %13 = sbr.rel target = $region3
    $region8: #{tpu_custom_call.1} parent=1 // loop_exit
      _
    %551 = vsyncpa [#allocation4], 1
    %s552 = scalar_lea.sflag [#allocation4], 1
    %553 = vsyncpa %s552, 1

</llo_original>
